<compile_context>
chip_gen: v7x
topology: tpu7x:2x2x1
jax: 0.10.0
libtpu: 0.0.40
codegen_flags: <defaults>
</compile_context>

<pallas_src>
import numpy as np
import jax
import jax.numpy as jnp
from jax.experimental import pallas as pl
from jax.experimental.pallas import tpu as pltpu

# ------------------------- configuration (small, deterministic) ----------------
NUM_CHANNELS = 2
PSD_LENGTH = 4.0          # seconds
KERNEL_LENGTH = 1.0       # seconds
FDURATION = 1.0           # seconds
SAMPLE_RATE = 128.0       # Hz
INFERENCE_SAMPLING_RATE = 4.0
FFTLENGTH = 2.0           # seconds
HIGHPASS = 8.0            # Hz

# ------------------------- derived sizes (exactly as in the torch module) ------
STEP_SIZE = int(SAMPLE_RATE / INFERENCE_SAMPLING_RATE)                    # 32
KERNEL_SIZE = int(KERNEL_LENGTH * SAMPLE_RATE)                            # 128
PSD_SIZE = int(PSD_LENGTH * SAMPLE_RATE)                                  # 512
FILTER_SIZE = int(FDURATION * SAMPLE_RATE)                                # 128
STATE_SIZE = PSD_SIZE + KERNEL_SIZE + FILTER_SIZE - STEP_SIZE             # 736
BATCH_SIZE = int(1 * INFERENCE_SAMPLING_RATE)                             # 4
STRIDE_SIZE = STEP_SIZE                                                   # 32
WHITEN_SIZE = (BATCH_SIZE - 1) * STRIDE_SIZE + KERNEL_SIZE + FILTER_SIZE  # 352
UPDATE_SIZE = int(SAMPLE_RATE)                                            # 128

NPERSEG = int(FFTLENGTH * SAMPLE_RATE)                                    # 256
NSTRIDE = NPERSEG // 2                                                    # 128
NFREQ = NPERSEG // 2                                                      # 128 lane-dense bins (Nyquist via repurposed column)
NUM_SEGMENTS = (PSD_SIZE - NPERSEG) // NSTRIDE + 1                        # 3
PAD = FILTER_SIZE // 2                                                    # 64
OUT_LEN = WHITEN_SIZE - FILTER_SIZE                                       # 224
NUM_WINDOWS = (OUT_LEN - KERNEL_SIZE) // STRIDE_SIZE + 1                  # 4 == BATCH_SIZE
R_FRAMES = NUM_CHANNELS * NUM_SEGMENTS                                    # 6 Welch frame rows
R_BLOCKS = 2 * NUM_CHANNELS                                               # 4 overlap-save block rows
HP_BIN = int(round(HIGHPASS * NPERSEG / SAMPLE_RATE))                     # 16  (8 Hz)
BLOCK_B_OFF = WHITEN_SIZE - NPERSEG                                       # 96


def _median_bias(n):
    ii_2 = 2.0 * np.arange(1, (n - 1) // 2 + 1)
    return float(1.0 + np.sum(1.0 / (ii_2 + 1.0) - 1.0 / ii_2))


MEDIAN_BIAS = _median_bias(NUM_SEGMENTS)


# ------------------------- deterministic constants (built in float64) ------------
def _build_constants():
    n = np.arange(NPERSEG, dtype=np.float64)
    k = np.arange(NFREQ, dtype=np.float64)
    j = np.arange(FILTER_SIZE, dtype=np.float64)
    alt_n = (-1.0) ** n          # e^{-i*pi*n}: Nyquist forward / inverse basis (256,)
    alt_j = (-1.0) ** j          # same for the 128-tap filter

    # forward DFT of a 256-sample row: [cos | -sin]  -> (256, 256).  Column 128
    # (Im(k=0), identically zero) repurposed to carry (-1)^n so the real Nyquist
    # coefficient comes out of the same matmul (no cross-lane reduce).
    ang = 2.0 * np.pi * np.outer(n, k) / NPERSEG
    dftmat = np.concatenate([np.cos(ang), -np.sin(ang)], axis=1)
    dftmat[:, NFREQ] = alt_n

    # Hann window with the PSD scale and the median bias folded in
    hann_p = 0.5 * (1.0 - np.cos(2.0 * np.pi * n / NPERSEG))
    scale = 1.0 / (SAMPLE_RATE * np.sum(hann_p ** 2))
    win_s = hann_p * np.sqrt(scale / MEDIAN_BIAS)

    # whitening-FIR build matrix (inverse one-sided DFT, Hann(FILTER_SIZE), sqrt(2/fs));
    # one-sided PSD weights folded in as sqrt(onesided_k) per row.
    n_time = np.mod(j - PAD, NPERSEG)
    hann_f = 0.5 * (1.0 - np.cos(2.0 * np.pi * j / FILTER_SIZE))
    onesided = np.where(k == 0, 1.0, 2.0)
    norm = np.sqrt(2.0 / SAMPLE_RATE)
    m2 = (np.sqrt(onesided)[:, None]
          * np.cos(2.0 * np.pi * np.outer(k, n_time) / NPERSEG) / NPERSEG
          * hann_f[None, :] * norm)                                       # (128, 128)
    m_nyq = (np.cos(2.0 * np.pi * (NPERSEG // 2) * n_time / NPERSEG) / NPERSEG
             * hann_f * norm)[None, :]                                    # (1, 128)

    # forward DFT of the (zero-padded) 128-tap filter: (128, 256) = [cos | -sin]
    angf = 2.0 * np.pi * np.outer(j, k) / NPERSEG
    fdft = np.concatenate([np.cos(angf), -np.sin(angf)], axis=1)

    # fused filter-response matrices (float64 offline):
    #   fz = inv_asd @ M2F + inv_nyq * MNYQF  == forward DFT of the whitening FIR.
    # Column 128 (Im(k=0), zero) carries the filter's (-1)^j Nyquist reduce.
    m2f = m2 @ fdft                                                       # (128, 256)
    m2f[:, NFREQ] = m2 @ alt_j
    mnyqf = m_nyq @ fdft                                                  # (1, 256)
    mnyqf[:, NFREQ] = m_nyq @ alt_j

    # one-sided inverse DFT: y = [Yr | Yi] @ IMAT, weights w_k / N folded into rows.
    # Row 128 (Im(k=0), zero) carries the Nyquist basis (-1)^n / N; the kernel stashes
    # yn into lane 0 of Yi so the Nyquist term rides the same matmul.
    w_k = np.where(k == 0, 1.0, 2.0) / NPERSEG
    angi = 2.0 * np.pi * np.outer(k, n) / NPERSEG
    imat = np.concatenate([w_k[:, None] * np.cos(angi),
                           -w_k[:, None] * np.sin(angi)], axis=0)         # (256, 256)
    imat[NFREQ, :] = alt_n / NPERSEG

    # small f32 constants merged into one padded (8, 256) operand:
    #   row 0 = Welch window (hann * sqrt(scale / median_bias))
    #   row 1 = MNYQF (stays f32 -- it is used element-wise, not on the MXU)
    small = np.zeros((8, NPERSEG), np.float64)
    small[0] = win_s
    small[1] = mnyqf[0]

    return (jnp.asarray(small, jnp.float32),
            jnp.asarray(dftmat, jnp.bfloat16),
            jnp.asarray(m2f, jnp.bfloat16),
            jnp.asarray(imat, jnp.bfloat16))


SMALL, DFTMAT, M2F, IMAT = _build_constants()


# ------------------------- fused Pallas kernel ----------------------------------
def _snapshot_whitener_kernel(state_ref, upd_ref, small_ref, dft_ref, m2f_ref,
                              imat_ref, out_ref, ns_ref):
    C = NUM_CHANNELS
    state = state_ref[0]                                        # (C, STATE_SIZE)
    upd = upd_ref[...]                                          # (C, UPDATE_SIZE)
    small = small_ref[...]                                      # (8, 256) f32

    # --- BackgroundSnapshotter: new_state = concat(state, update)[..., -STATE_SIZE:]
    #     (written in place -- ns output is aliased with the state input)
    ns_ref[...] = jnp.concatenate([state[:, UPDATE_SIZE:], upd], axis=-1)[None]

    # --- PsdEstimator split of x = concat(state, update):
    #     background = x[:, :PSD_SIZE] == state[:, :PSD_SIZE]
    #     xw         = x[:, -WHITEN_SIZE:]
    xw = jnp.concatenate([state[:, PSD_SIZE:], upd], axis=-1)   # (C, WHITEN_SIZE)

    # --- Welch frames (128-aligned slices) + overlap-save blocks, one forward DFT
    frames = jnp.concatenate(
        [state[:, s * NSTRIDE: s * NSTRIDE + NPERSEG] for s in range(NUM_SEGMENTS)],
        axis=0)                                                 # (6, 256), rows (seg, ch)
    frames = frames - jnp.mean(frames, axis=-1, keepdims=True)  # constant detrend
    frames = frames * small[0:1, :]                             # hann * sqrt(scale / bias)
    blocks = jnp.concatenate([xw[:, :NPERSEG], xw[:, BLOCK_B_OFF:]], axis=0)  # (4,256)

    rows = jnp.concatenate([frames, blocks], axis=0)            # (10, 256) f32
    # bf16 operands, f32 accumulate (precision explicit by construction)
    z = jnp.dot(rows.astype(jnp.bfloat16), dft_ref[...],
                preferred_element_type=jnp.float32)             # (10, 256) = [Re | Im*]
    lane = jax.lax.broadcasted_iota(jnp.int32, (R_FRAMES + R_BLOCKS, NFREQ), 1)
    re = z[:, :NFREQ]                                           # (10, 128)
    znyq = z[:, NFREQ:NFREQ + 1]                                # (10, 1) real Nyquist bin
    im = jnp.where(lane == 0, 0.0, z[:, NFREQ:])                # restore Im(k=0) == 0

    # --- median-of-3 Welch periodograms (scale/bias folded into the window)
    pg = re[:R_FRAMES] * re[:R_FRAMES] + im[:R_FRAMES] * im[:R_FRAMES]   # (6, 128)
    pgn = znyq[:R_FRAMES] * znyq[:R_FRAMES]                              # (6, 1)

    def med3(a, b, c):
        return jnp.maximum(jnp.minimum(a, b), jnp.minimum(jnp.maximum(a, b), c))

    psd = med3(pg[0:C], pg[C:2 * C], pg[2 * C:3 * C])                    # (C, 128)
    psd_nyq = med3(pgn[0:C], pgn[C:2 * C], pgn[2 * C:3 * C])             # (C, 1)

    # --- inverse ASD (highpass via iota) -> whitening-filter spectrum in ONE matmul
    kidx = lane[:C]                                                      # (C, 128)
    eps = 1e-30  # TODO(synk): torch ref gives inf for a cold all-zero PSD; clamp keeps it finite
    inv_asd = jnp.where(kidx >= HP_BIN, jax.lax.rsqrt(jnp.maximum(psd, eps)), 0.0)
    inv_nyq = jax.lax.rsqrt(jnp.maximum(psd_nyq, eps))          # 64 Hz >= HIGHPASS -> kept

    fz = (jnp.dot(inv_asd.astype(jnp.bfloat16), m2f_ref[...],
                  preferred_element_type=jnp.float32)
          + inv_nyq * small[1:2, :])                            # (C, 256)
    fr = fz[:, :NFREQ]
    fn = fz[:, NFREQ:NFREQ + 1]                                 # filter Nyquist (column 128)
    fi = jnp.where(kidx == 0, 0.0, fz[:, NFREQ:])               # restore Im(k=0) == 0

    # --- overlap-save: Y = X * conj(F), then one-sided inverse DFT (all MXU)
    xr, xi, xn = re[R_FRAMES:], im[R_FRAMES:], znyq[R_FRAMES:]  # (4,128),(4,128),(4,1)
    fr2 = jnp.concatenate([fr, fr], axis=0)                     # tile per-channel F over 2 blocks
    fi2 = jnp.concatenate([fi, fi], axis=0)
    fn2 = jnp.concatenate([fn, fn], axis=0)
    yr = xr * fr2 + xi * fi2
    yi = xi * fr2 - xr * fi2
    yn = xn * fn2
    # stash the real Nyquist product in the (zero) Im(k=0) lane; IMAT row 128 is
    # (-1)^n / N, so the Nyquist basis rides the same inverse-DFT matmul.
    yi = jnp.where(lane[:R_BLOCKS] == 0, yn, yi)
    y = jnp.dot(jnp.concatenate([yr, yi], axis=-1).astype(jnp.bfloat16),
                imat_ref[...], preferred_element_type=jnp.float32)       # (4, 256)

    # non-wrapped (valid) samples: block A -> out[0:128], block B -> out[128:224]
    out224 = jnp.concatenate(
        [y[0:C, :KERNEL_SIZE],
         y[C:2 * C, KERNEL_SIZE - BLOCK_B_OFF: OUT_LEN - BLOCK_B_OFF]],
        axis=-1)                                                # (C, OUT_LEN)

    # unfold_windows(kernel_size, stride) -> lane-dense (NUM_WINDOWS*C, 128) output
    out_ref[...] = jnp.concatenate(
        [out224[:, w * STRIDE_SIZE: w * STRIDE_SIZE + KERNEL_SIZE]
         for w in range(NUM_WINDOWS)],
        axis=0)


def _fused_call(current_state, update):
    def full(shape):
        return pl.BlockSpec(shape, lambda i, _s=shape: (0,) * len(_s))

    return pl.pallas_call(
        _snapshot_whitener_kernel,
        out_shape=(
            jax.ShapeDtypeStruct((NUM_WINDOWS * NUM_CHANNELS, KERNEL_SIZE), jnp.float32),
            jax.ShapeDtypeStruct((1, NUM_CHANNELS, STATE_SIZE), jnp.float32),
        ),
        grid=(1,),
        in_specs=[
            full((1, NUM_CHANNELS, STATE_SIZE)),      # current_state
            full((NUM_CHANNELS, UPDATE_SIZE)),        # update
            full((8, NPERSEG)),                       # merged small constants (f32)
            full((NPERSEG, 2 * NFREQ)),               # forward DFT (bf16)
            full((NFREQ, 2 * NFREQ)),                 # fused M2 @ FDFT (bf16)
            full((2 * NFREQ, NPERSEG)),               # one-sided inverse DFT (bf16)
        ],
        out_specs=(
            full((NUM_WINDOWS * NUM_CHANNELS, KERNEL_SIZE)),
            full((1, NUM_CHANNELS, STATE_SIZE)),
        ),
        input_output_aliases={0: 1},                  # state shift written in place
        compiler_params=pltpu.CompilerParams(dimension_semantics=("arbitrary",)),
    )(current_state, update, SMALL, DFTMAT, M2F, IMAT)


# ------------------------- forward (wrapper is metadata-only) --------------------
@jax.jit
def snapshot_whitener_forward(update, current_state):
    out8, new_state = _fused_call(current_state, update)
    out = out8.reshape(NUM_WINDOWS, NUM_CHANNELS, KERNEL_SIZE)   # row-major, metadata-only
    return out, new_state


class SnapshotWhitener:
    """Python-side stateful wrapper mirroring the torch module's forward()."""

    def __init__(self):
        self.contiguous_update_size = 0

    @property
    def state_size(self):
        return STATE_SIZE

    def get_initial_state(self):
        self.contiguous_update_size = 0
        return jnp.zeros((1, NUM_CHANNELS, STATE_SIZE), jnp.float32)

    def __call__(self, update, current_state):
        out, new_state = snapshot_whitener_forward(update, current_state)
        full_psd_present = self.contiguous_update_size >= STATE_SIZE - update.shape[-1]
        if not full_psd_present:
            self.contiguous_update_size += update.shape[-1]
        return out, new_state, full_psd_present


# ------------------------- float64 numpy reference (same approximations) ---------
def _reference_forward(update, current_state):
    state = np.asarray(current_state, np.float64)
    upd = np.asarray(update, np.float64)[None]
    x = np.concatenate([state, upd], axis=-1)                    # (1, C, STATE+U)
    new_state = x[:, :, -STATE_SIZE:]
    background = x[0, :, : x.shape[-1] - WHITEN_SIZE]            # (C, PSD_SIZE)
    xw = x[0, :, -WHITEN_SIZE:]                                  # (C, WHITEN_SIZE)

    n = np.arange(NPERSEG)
    k = np.arange(NPERSEG // 2 + 1)
    hann_p = 0.5 * (1.0 - np.cos(2.0 * np.pi * n / NPERSEG))
    scale = 1.0 / (SAMPLE_RATE * np.sum(hann_p ** 2))
    onesided = np.where((k == 0) | (k == NPERSEG // 2), 1.0, 2.0)

    pgs = []
    for s in range(NUM_SEGMENTS):
        seg = background[:, s * NSTRIDE: s * NSTRIDE + NPERSEG]
        seg = seg - seg.mean(axis=-1, keepdims=True)
        spec = np.fft.rfft(seg * hann_p, axis=-1)
        pgs.append((np.abs(spec) ** 2) * scale * onesided)
    pg = np.stack(pgs, axis=1)                                   # (C, nseg, 129)
    psd = np.median(pg, axis=1) / MEDIAN_BIAS                    # (C, 129)

    freqs = k * SAMPLE_RATE / NPERSEG
    inv_asd = np.where(freqs >= HIGHPASS, 1.0 / np.sqrt(psd), 0.0)
    taps = np.arange(FILTER_SIZE)
    n_time = np.mod(taps - PAD, NPERSEG)
    hann_f = 0.5 * (1.0 - np.cos(2.0 * np.pi * taps / FILTER_SIZE))
    weights = np.where((k == 0) | (k == NPERSEG // 2), 1.0, 2.0)
    m = (weights[:, None] * np.cos(2.0 * np.pi * np.outer(k, n_time) / NPERSEG) / NPERSEG
         * hann_f[None, :] * np.sqrt(2.0 / SAMPLE_RATE))
    filt = inv_asd @ m                                           # (C, FILTER_SIZE)

    out = np.zeros((NUM_CHANNELS, OUT_LEN))
    for t in range(OUT_LEN):
        out[:, t] = np.sum(xw[:, t: t + FILTER_SIZE] * filt, axis=-1)
    wins = np.stack([out[:, w * STRIDE_SIZE: w * STRIDE_SIZE + KERNEL_SIZE]
                     for w in range(NUM_WINDOWS)], axis=0)       # (4, C, 128)
    return wins, new_state


if __name__ == "__main__":
    key = jax.random.PRNGKey(0)
    k1, k2 = jax.random.split(key)
    update = jax.random.normal(k1, (NUM_CHANNELS, UPDATE_SIZE), jnp.float32)
    # Warm (non-zero) state so the PSD is non-degenerate; the all-zero initial
    # state would give a ~zero PSD (clamped to eps in-kernel).
    current_state = jax.random.normal(k2, (1, NUM_CHANNELS, STATE_SIZE), jnp.float32)

    # Snapshot inputs for the reference BEFORE running (state output is aliased in
    # place at the pallas_call level; inputs themselves are not donated, but keep
    # the reference path clearly independent).
    update_np = np.asarray(update)
    state_np = np.asarray(current_state)

    module = SnapshotWhitener()
    out, new_state, full_psd_present = module(update, current_state)
    jax.block_until_ready((out, new_state))

    assert out.shape == (BATCH_SIZE, NUM_CHANNELS, KERNEL_SIZE)
    assert new_state.shape == (1, NUM_CHANNELS, STATE_SIZE)
    assert bool(jnp.all(jnp.isfinite(out)))

    ref_out, ref_state = _reference_forward(update_np, state_np)
    np.testing.assert_array_equal(np.asarray(new_state), ref_state.astype(np.float32))
    out_np = np.asarray(out, np.float64)
    rel = np.linalg.norm(out_np - ref_out) / np.linalg.norm(ref_out)
    assert rel < 5e-2, f"whitened output mismatch: relative L2 error {rel}"

    print("KERNEL_OK")
</pallas_src>

<mosaic_0001>
module attributes {stable_mosaic.version = 11 : i64} {
  func.func @_snapshot_whitener_kernel(%arg0: i32, %arg1: memref<1x2x736xf32, #tpu.memory_space<vmem>>, %arg2: memref<2x128xf32, #tpu.memory_space<vmem>>, %arg3: memref<8x256xf32, #tpu.memory_space<vmem>>, %arg4: memref<256x256xbf16, #tpu.memory_space<vmem>>, %arg5: memref<128x256xbf16, #tpu.memory_space<vmem>>, %arg6: memref<256x256xbf16, #tpu.memory_space<vmem>>, %arg7: memref<8x128xf32, #tpu.memory_space<vmem>>, %arg8: memref<1x2x736xf32, #tpu.memory_space<vmem>>) attributes {dimension_semantics = [#tpu.dimension_semantics<arbitrary>], iteration_bounds = array<i64: 1>, scalar_prefetch = 0 : i64, scratch_operands = 0 : i64, tpu.core_type = #tpu.core_type<tc>, window_params = [{pipeline_mode = #tpu.pipeline_mode<synchronous>, transform_indices = @transform_0, window_bounds = array<i64: 1, 2, 736>}, {pipeline_mode = #tpu.pipeline_mode<synchronous>, transform_indices = @transform_1, window_bounds = array<i64: 2, 128>}, {pipeline_mode = #tpu.pipeline_mode<synchronous>, transform_indices = @transform_2, window_bounds = array<i64: 8, 256>}, {pipeline_mode = #tpu.pipeline_mode<synchronous>, transform_indices = @transform_3, window_bounds = array<i64: 256, 256>}, {pipeline_mode = #tpu.pipeline_mode<synchronous>, transform_indices = @transform_4, window_bounds = array<i64: 128, 256>}, {pipeline_mode = #tpu.pipeline_mode<synchronous>, transform_indices = @transform_5, window_bounds = array<i64: 256, 256>}, {pipeline_mode = #tpu.pipeline_mode<synchronous>, transform_indices = @transform_6, window_bounds = array<i64: 8, 128>}, {pipeline_mode = #tpu.pipeline_mode<synchronous>, transform_indices = @transform_7, window_bounds = array<i64: 1, 2, 736>}]} {
    %c0 = arith.constant 0 : index
    %c0_0 = arith.constant 0 : index
    %c0_1 = arith.constant 0 : index
    %0 = vector.load %arg1[%c0, %c0_0, %c0_1] : memref<1x2x736xf32, #tpu.memory_space<vmem>>, vector<1x2x736xf32>
    %1 = vector.shape_cast %0 : vector<1x2x736xf32> to vector<2x736xf32>
    %c0_2 = arith.constant 0 : index
    %c0_3 = arith.constant 0 : index
    %2 = vector.load %arg2[%c0_2, %c0_3] : memref<2x128xf32, #tpu.memory_space<vmem>>, vector<2x128xf32>
    %c0_4 = arith.constant 0 : index
    %c0_5 = arith.constant 0 : index
    %3 = vector.load %arg3[%c0_4, %c0_5] : memref<8x256xf32, #tpu.memory_space<vmem>>, vector<8x256xf32>
    %4 = vector.extract_strided_slice %1 {offsets = [0, 128], sizes = [2, 608], strides = [1, 1]} : vector<2x736xf32> to vector<2x608xf32>
    %5 = tpu.concatenate %4, %2 in 1 : vector<2x608xf32>, vector<2x128xf32> -> vector<2x736xf32>
    %6 = vector.shape_cast %5 : vector<2x736xf32> to vector<1x2x736xf32>
    %c0_6 = arith.constant 0 : index
    %c0_7 = arith.constant 0 : index
    %c0_8 = arith.constant 0 : index
    %7 = vector.load %arg8[%c0_6, %c0_7, %c0_8] : memref<1x2x736xf32, #tpu.memory_space<vmem>>, vector<1x2x736xf32>
    tpu.vector_store %arg8[%c0_6, %c0_7, %c0_8], %6 {strides = array<i32>} : memref<1x2x736xf32, #tpu.memory_space<vmem>>, vector<1x2x736xf32>,
    %8 = vector.extract_strided_slice %1 {offsets = [0, 512], sizes = [2, 224], strides = [1, 1]} : vector<2x736xf32> to vector<2x224xf32>
    %9 = tpu.concatenate %8, %2 in 1 : vector<2x224xf32>, vector<2x128xf32> -> vector<2x352xf32>
    %10 = vector.extract_strided_slice %1 {offsets = [0, 0], sizes = [2, 256], strides = [1, 1]} : vector<2x736xf32> to vector<2x256xf32>
    %11 = vector.extract_strided_slice %1 {offsets = [0, 128], sizes = [2, 256], strides = [1, 1]} : vector<2x736xf32> to vector<2x256xf32>
    %12 = vector.extract_strided_slice %1 {offsets = [0, 256], sizes = [2, 256], strides = [1, 1]} : vector<2x736xf32> to vector<2x256xf32>
    %13 = tpu.concatenate %10, %11, %12 in 0 : vector<2x256xf32>, vector<2x256xf32>, vector<2x256xf32> -> vector<6x256xf32>
    %cst = arith.constant dense<0.000000e+00> : vector<6xf32>
    %14 = vector.multi_reduction <add>, %13, %cst [1] : vector<6x256xf32> to vector<6xf32>
    %15 = vector.shape_cast %14 : vector<6xf32> to vector<6x1xf32>
    %cst_9 = arith.constant 2.560000e+02 : f32
    %16 = vector.broadcast %cst_9 : f32 to vector<6x1xf32>
    %17 = arith.divf %15, %16 : vector<6x1xf32>
    %18 = vector.broadcast %17 : vector<6x1xf32> to vector<6x256xf32>
    %19 = arith.subf %13, %18 : vector<6x256xf32>
    %20 = vector.extract_strided_slice %3 {offsets = [0, 0], sizes = [1, 256], strides = [1, 1]} : vector<8x256xf32> to vector<1x256xf32>
    %21 = vector.broadcast %20 : vector<1x256xf32> to vector<6x256xf32>
    %22 = arith.mulf %19, %21 : vector<6x256xf32>
    %23 = vector.extract_strided_slice %9 {offsets = [0, 0], sizes = [2, 256], strides = [1, 1]} : vector<2x352xf32> to vector<2x256xf32>
    %24 = vector.extract_strided_slice %9 {offsets = [0, 96], sizes = [2, 256], strides = [1, 1]} : vector<2x352xf32> to vector<2x256xf32>
    %25 = tpu.concatenate %23, %24 in 0 : vector<2x256xf32>, vector<2x256xf32> -> vector<4x256xf32>
    %26 = tpu.concatenate %22, %25 in 0 : vector<6x256xf32>, vector<4x256xf32> -> vector<10x256xf32>
    %27 = arith.truncf %26 : vector<10x256xf32> to vector<10x256xbf16>
    %c0_10 = arith.constant 0 : index
    %c0_11 = arith.constant 0 : index
    %28 = vector.load %arg4[%c0_10, %c0_11] : memref<256x256xbf16, #tpu.memory_space<vmem>>, vector<256x256xbf16>
    %cst_12 = arith.constant dense<0.000000e+00> : vector<10x256xf32>
    %29 = tpu.matmul %27, %28, %cst_12 {dimension_numbers = #tpu.dot_dimension_numbers<[1], [0], [0], [1], [0, 0, 1, 1], [], []>} : vector<10x256xbf16>, vector<256x256xbf16>, vector<10x256xf32> -> vector<10x256xf32>
    %30 = tpu.iota {dimensions = array<i32: 1>} : vector<10x128xi32>
    %31 = vector.extract_strided_slice %29 {offsets = [0, 0], sizes = [10, 128], strides = [1, 1]} : vector<10x256xf32> to vector<10x128xf32>
    %32 = vector.extract_strided_slice %29 {offsets = [0, 128], sizes = [10, 1], strides = [1, 1]} : vector<10x256xf32> to vector<10x1xf32>
    %c0_i32 = arith.constant 0 : i32
    %33 = vector.broadcast %c0_i32 : i32 to vector<10x128xi32>
    %34 = arith.cmpi eq, %30, %33 : vector<10x128xi32>
    %35 = vector.extract_strided_slice %29 {offsets = [0, 128], sizes = [10, 128], strides = [1, 1]} : vector<10x256xf32> to vector<10x128xf32>
    %cst_13 = arith.constant 0.000000e+00 : f32
    %36 = vector.broadcast %cst_13 : f32 to vector<10x128xf32>
    %37 = arith.select %34, %36, %35 : vector<10x128xi1>, vector<10x128xf32>
    %38 = vector.extract_strided_slice %31 {offsets = [0, 0], sizes = [6, 128], strides = [1, 1]} : vector<10x128xf32> to vector<6x128xf32>
    %39 = vector.extract_strided_slice %31 {offsets = [0, 0], sizes = [6, 128], strides = [1, 1]} : vector<10x128xf32> to vector<6x128xf32>
    %40 = arith.mulf %38, %39 : vector<6x128xf32>
    %41 = vector.extract_strided_slice %37 {offsets = [0, 0], sizes = [6, 128], strides = [1, 1]} : vector<10x128xf32> to vector<6x128xf32>
    %42 = vector.extract_strided_slice %37 {offsets = [0, 0], sizes = [6, 128], strides = [1, 1]} : vector<10x128xf32> to vector<6x128xf32>
    %43 = arith.mulf %41, %42 : vector<6x128xf32>
    %44 = arith.addf %40, %43 : vector<6x128xf32>
    %45 = vector.extract_strided_slice %32 {offsets = [0, 0], sizes = [6, 1], strides = [1, 1]} : vector<10x1xf32> to vector<6x1xf32>
    %46 = vector.extract_strided_slice %32 {offsets = [0, 0], sizes = [6, 1], strides = [1, 1]} : vector<10x1xf32> to vector<6x1xf32>
    %47 = arith.mulf %45, %46 : vector<6x1xf32>
    %48 = vector.extract_strided_slice %44 {offsets = [0, 0], sizes = [2, 128], strides = [1, 1]} : vector<6x128xf32> to vector<2x128xf32>
    %49 = vector.extract_strided_slice %44 {offsets = [2, 0], sizes = [2, 128], strides = [1, 1]} : vector<6x128xf32> to vector<2x128xf32>
    %50 = vector.extract_strided_slice %44 {offsets = [4, 0], sizes = [2, 128], strides = [1, 1]} : vector<6x128xf32> to vector<2x128xf32>
    %51 = arith.minimumf %48, %49 : vector<2x128xf32>
    %52 = arith.maximumf %48, %49 : vector<2x128xf32>
    %53 = arith.minimumf %52, %50 : vector<2x128xf32>
    %54 = arith.maximumf %51, %53 : vector<2x128xf32>
    %55 = vector.extract_strided_slice %47 {offsets = [0, 0], sizes = [2, 1], strides = [1, 1]} : vector<6x1xf32> to vector<2x1xf32>
    %56 = vector.extract_strided_slice %47 {offsets = [2, 0], sizes = [2, 1], strides = [1, 1]} : vector<6x1xf32> to vector<2x1xf32>
    %57 = vector.extract_strided_slice %47 {offsets = [4, 0], sizes = [2, 1], strides = [1, 1]} : vector<6x1xf32> to vector<2x1xf32>
    %58 = arith.minimumf %55, %56 : vector<2x1xf32>
    %59 = arith.maximumf %55, %56 : vector<2x1xf32>
    %60 = arith.minimumf %59, %57 : vector<2x1xf32>
    %61 = arith.maximumf %58, %60 : vector<2x1xf32>
    %62 = vector.extract_strided_slice %30 {offsets = [0, 0], sizes = [2, 128], strides = [1, 1]} : vector<10x128xi32> to vector<2x128xi32>
    %c16_i32 = arith.constant 16 : i32
    %63 = vector.broadcast %c16_i32 : i32 to vector<2x128xi32>
    %64 = arith.cmpi sge, %62, %63 : vector<2x128xi32>
    %cst_14 = arith.constant 1.000000e-30 : f32
    %65 = vector.broadcast %cst_14 : f32 to vector<2x128xf32>
    %66 = arith.maximumf %54, %65 : vector<2x128xf32>
    %67 = math.rsqrt %66 : vector<2x128xf32>
    %cst_15 = arith.constant 0.000000e+00 : f32
    %68 = vector.broadcast %cst_15 : f32 to vector<2x128xf32>
    %69 = arith.select %64, %67, %68 : vector<2x128xi1>, vector<2x128xf32>
    %cst_16 = arith.constant 1.000000e-30 : f32
    %70 = vector.broadcast %cst_16 : f32 to vector<2x1xf32>
    %71 = arith.maximumf %61, %70 : vector<2x1xf32>
    %72 = math.rsqrt %71 : vector<2x1xf32>
    %73 = arith.truncf %69 : vector<2x128xf32> to vector<2x128xbf16>
    %c0_17 = arith.constant 0 : index
    %c0_18 = arith.constant 0 : index
    %74 = vector.load %arg5[%c0_17, %c0_18] : memref<128x256xbf16, #tpu.memory_space<vmem>>, vector<128x256xbf16>
    %cst_19 = arith.constant dense<0.000000e+00> : vector<2x256xf32>
    %75 = tpu.matmul %73, %74, %cst_19 {dimension_numbers = #tpu.dot_dimension_numbers<[1], [0], [0], [1], [0, 0, 1, 1], [], []>} : vector<2x128xbf16>, vector<128x256xbf16>, vector<2x256xf32> -> vector<2x256xf32>
    %76 = vector.extract_strided_slice %3 {offsets = [1, 0], sizes = [1, 256], strides = [1, 1]} : vector<8x256xf32> to vector<1x256xf32>
    %77 = vector.broadcast %72 : vector<2x1xf32> to vector<2x256xf32>
    %78 = vector.broadcast %76 : vector<1x256xf32> to vector<2x256xf32>
    %79 = arith.mulf %77, %78 : vector<2x256xf32>
    %80 = arith.addf %75, %79 : vector<2x256xf32>
    %81 = vector.extract_strided_slice %80 {offsets = [0, 0], sizes = [2, 128], strides = [1, 1]} : vector<2x256xf32> to vector<2x128xf32>
    %82 = vector.extract_strided_slice %80 {offsets = [0, 128], sizes = [2, 1], strides = [1, 1]} : vector<2x256xf32> to vector<2x1xf32>
    %c0_i32_20 = arith.constant 0 : i32
    %83 = vector.broadcast %c0_i32_20 : i32 to vector<2x128xi32>
    %84 = arith.cmpi eq, %62, %83 : vector<2x128xi32>
    %85 = vector.extract_strided_slice %80 {offsets = [0, 128], sizes = [2, 128], strides = [1, 1]} : vector<2x256xf32> to vector<2x128xf32>
    %cst_21 = arith.constant 0.000000e+00 : f32
    %86 = vector.broadcast %cst_21 : f32 to vector<2x128xf32>
    %87 = arith.select %84, %86, %85 : vector<2x128xi1>, vector<2x128xf32>
    %88 = vector.extract_strided_slice %31 {offsets = [6, 0], sizes = [4, 128], strides = [1, 1]} : vector<10x128xf32> to vector<4x128xf32>
    %89 = vector.extract_strided_slice %37 {offsets = [6, 0], sizes = [4, 128], strides = [1, 1]} : vector<10x128xf32> to vector<4x128xf32>
    %90 = vector.extract_strided_slice %32 {offsets = [6, 0], sizes = [4, 1], strides = [1, 1]} : vector<10x1xf32> to vector<4x1xf32>
    %91 = tpu.concatenate %81, %81 in 0 : vector<2x128xf32>, vector<2x128xf32> -> vector<4x128xf32>
    %92 = tpu.concatenate %87, %87 in 0 : vector<2x128xf32>, vector<2x128xf32> -> vector<4x128xf32>
    %93 = tpu.concatenate %82, %82 in 0 : vector<2x1xf32>, vector<2x1xf32> -> vector<4x1xf32>
    %94 = arith.mulf %88, %91 : vector<4x128xf32>
    %95 = arith.mulf %89, %92 : vector<4x128xf32>
    %96 = arith.addf %94, %95 : vector<4x128xf32>
    %97 = arith.mulf %89, %91 : vector<4x128xf32>
    %98 = arith.mulf %88, %92 : vector<4x128xf32>
    %99 = arith.subf %97, %98 : vector<4x128xf32>
    %100 = arith.mulf %90, %93 : vector<4x1xf32>
    %101 = vector.extract_strided_slice %30 {offsets = [0, 0], sizes = [4, 128], strides = [1, 1]} : vector<10x128xi32> to vector<4x128xi32>
    %c0_i32_22 = arith.constant 0 : i32
    %102 = vector.broadcast %c0_i32_22 : i32 to vector<4x128xi32>
    %103 = arith.cmpi eq, %101, %102 : vector<4x128xi32>
    %104 = vector.shape_cast %100 : vector<4x1xf32> to vector<4x1xf32>
    %105 = vector.broadcast %104 : vector<4x1xf32> to vector<4x128xf32>
    %106 = arith.select %103, %105, %99 : vector<4x128xi1>, vector<4x128xf32>
    %107 = tpu.concatenate %96, %106 in 1 : vector<4x128xf32>, vector<4x128xf32> -> vector<4x256xf32>
    %108 = arith.truncf %107 : vector<4x256xf32> to vector<4x256xbf16>
    %c0_23 = arith.constant 0 : index
    %c0_24 = arith.constant 0 : index
    %109 = vector.load %arg6[%c0_23, %c0_24] : memref<256x256xbf16, #tpu.memory_space<vmem>>, vector<256x256xbf16>
    %cst_25 = arith.constant dense<0.000000e+00> : vector<4x256xf32>
    %110 = tpu.matmul %108, %109, %cst_25 {dimension_numbers = #tpu.dot_dimension_numbers<[1], [0], [0], [1], [0, 0, 1, 1], [], []>} : vector<4x256xbf16>, vector<256x256xbf16>, vector<4x256xf32> -> vector<4x256xf32>
    %111 = vector.extract_strided_slice %110 {offsets = [0, 0], sizes = [2, 128], strides = [1, 1]} : vector<4x256xf32> to vector<2x128xf32>
    %112 = vector.extract_strided_slice %110 {offsets = [2, 32], sizes = [2, 96], strides = [1, 1]} : vector<4x256xf32> to vector<2x96xf32>
    %113 = tpu.concatenate %111, %112 in 1 : vector<2x128xf32>, vector<2x96xf32> -> vector<2x224xf32>
    %114 = vector.extract_strided_slice %113 {offsets = [0, 0], sizes = [2, 128], strides = [1, 1]} : vector<2x224xf32> to vector<2x128xf32>
    %115 = vector.extract_strided_slice %113 {offsets = [0, 32], sizes = [2, 128], strides = [1, 1]} : vector<2x224xf32> to vector<2x128xf32>
    %116 = vector.extract_strided_slice %113 {offsets = [0, 64], sizes = [2, 128], strides = [1, 1]} : vector<2x224xf32> to vector<2x128xf32>
    %117 = vector.extract_strided_slice %113 {offsets = [0, 96], sizes = [2, 128], strides = [1, 1]} : vector<2x224xf32> to vector<2x128xf32>
    %118 = tpu.concatenate %114, %115, %116, %117 in 0 : vector<2x128xf32>, vector<2x128xf32>, vector<2x128xf32>, vector<2x128xf32> -> vector<8x128xf32>
    %c0_26 = arith.constant 0 : index
    %c0_27 = arith.constant 0 : index
    %119 = vector.load %arg7[%c0_26, %c0_27] : memref<8x128xf32, #tpu.memory_space<vmem>>, vector<8x128xf32>
    tpu.vector_store %arg7[%c0_26, %c0_27], %118 {strides = array<i32>} : memref<8x128xf32, #tpu.memory_space<vmem>>, vector<8x128xf32>,
    return
  }
  func.func @transform_0(%arg0: i32) -> (i32, i32, i32) {
    %c0_i32 = arith.constant 0 : i32
    %c0_i32_0 = arith.constant 0 : i32
    %c0_i32_1 = arith.constant 0 : i32
    %c0_i32_2 = arith.constant 0 : i32
    return %c0_i32, %c0_i32_0, %c0_i32_1 : i32, i32, i32
  }
  func.func @transform_1(%arg0: i32) -> (i32, i32) {
    %c0_i32 = arith.constant 0 : i32
    %c0_i32_0 = arith.constant 0 : i32
    %c0_i32_1 = arith.constant 0 : i32
    return %c0_i32, %c0_i32_0 : i32, i32
  }
  func.func @transform_2(%arg0: i32) -> (i32, i32) {
    %c0_i32 = arith.constant 0 : i32
    %c0_i32_0 = arith.constant 0 : i32
    %c0_i32_1 = arith.constant 0 : i32
    return %c0_i32, %c0_i32_0 : i32, i32
  }
  func.func @transform_3(%arg0: i32) -> (i32, i32) {
    %c0_i32 = arith.constant 0 : i32
    %c0_i32_0 = arith.constant 0 : i32
    %c0_i32_1 = arith.constant 0 : i32
    return %c0_i32, %c0_i32_0 : i32, i32
  }
  func.func @transform_4(%arg0: i32) -> (i32, i32) {
    %c0_i32 = arith.constant 0 : i32
    %c0_i32_0 = arith.constant 0 : i32
    %c0_i32_1 = arith.constant 0 : i32
    return %c0_i32, %c0_i32_0 : i32, i32
  }
  func.func @transform_5(%arg0: i32) -> (i32, i32) {
    %c0_i32 = arith.constant 0 : i32
    %c0_i32_0 = arith.constant 0 : i32
    %c0_i32_1 = arith.constant 0 : i32
    return %c0_i32, %c0_i32_0 : i32, i32
  }
  func.func @transform_6(%arg0: i32) -> (i32, i32) {
    %c0_i32 = arith.constant 0 : i32
    %c0_i32_0 = arith.constant 0 : i32
    %c0_i32_1 = arith.constant 0 : i32
    return %c0_i32, %c0_i32_0 : i32, i32
  }
  func.func @transform_7(%arg0: i32) -> (i32, i32, i32) {
    %c0_i32 = arith.constant 0 : i32
    %c0_i32_0 = arith.constant 0 : i32
    %c0_i32_1 = arith.constant 0 : i32
    %c0_i32_2 = arith.constant 0 : i32
    return %c0_i32, %c0_i32_0, %c0_i32_1 : i32, i32, i32
  }
}

</mosaic_0001>

<llo_original>
// kernel: snapshot_whitener_forward.1
$region0: #{snapshot_whitener_forward.1}
  #allocation0 [shape = 'u32[]', space=smem, size = 0x4, offset = 0x4, fixed_abs, tag = 'smem constant byte address 0x4 - core index']
  #allocation1 [shape = 'u32[144,128]{1,0:T(1,128)}', space=vmem, size = 0x12000, scoped, tag = 'internal scratch']
  %s0 = inlined_call_operand.vmem [shape: f32[1,2,736], index: 0, kind: input, shape index: {}, may-alias: {0,7}]
  %s1 = inlined_call_operand.vmem [shape: f32[2,128], index: 1, kind: input, shape index: {}]
  %s2 = inlined_call_operand.vmem [shape: f32[8,256], index: 2, kind: input, shape index: {}]
  %s3 = inlined_call_operand.vmem [shape: bf16[256,256], index: 3, kind: input, shape index: {}]
  %s4 = inlined_call_operand.vmem [shape: bf16[128,256], index: 4, kind: input, shape index: {}]
  %s5 = inlined_call_operand.vmem [shape: bf16[256,256], index: 5, kind: input, shape index: {}]
  %s6 = inlined_call_operand.hbm [shape: f32[8,128], index: 6, kind: output, shape index: {0}]
  %s7 = inlined_call_operand.vmem [shape: f32[1,2,736], index: 7, kind: output, shape index: {1}, may-alias: {0,7}]
  %8 = xla_tuple %s6, %s7
  %s9 = sld [smem:[#allocation0]]
  $region42: #{snapshot_whitener_forward.1} parent=0
    _
  %s11 = ssub.s32 1, %s9
  %s12 = scalar_select 0, %s11, %s9
  $region1: #{snapshot_whitener_forward.1} parent=0
    #allocation2 [shape = 'u8[4096]{0}', space=vmem, size = 0x1000, scoped, tag = 'output window, operand 0, single buffered']
    #allocation3 [shape = 's32[1]{0}', space=sflag, size = 0x4, scoped, tag = 'scoped memory for snapshot_whitener_forward.1']
    %13 = vsyncpa [#allocation3], 0
    // Predicated region
    $region2: #{snapshot_whitener_forward.1} parent=1 // pred_check
      _
    $region3: #{snapshot_whitener_forward.1} parent=1 // pred_check_branch
      %15 = sbr.rel (0) target = $region5
    $region4: #{snapshot_whitener_forward.1} parent=1 // pred_region
      _
    $region5: #{snapshot_whitener_forward.1} parent=1 // pred_fallthru
      _
    // Predicated region
    $region6: #{snapshot_whitener_forward.1} parent=1 // pred_check
      _
    $region7: #{snapshot_whitener_forward.1} parent=1 // pred_check_branch
      %17 = sbr.rel (0) target = $region9
    $region8: #{snapshot_whitener_forward.1} parent=1 // pred_region
      _
    $region9: #{snapshot_whitener_forward.1} parent=1 // pred_fallthru
      _
    // Predicated region
    $region10: #{snapshot_whitener_forward.1} parent=1 // pred_check
      _
    $region11: #{snapshot_whitener_forward.1} parent=1 // pred_check_branch
      %19 = sbr.rel (0) target = $region13
    $region12: #{snapshot_whitener_forward.1} parent=1 // pred_region
      _
    $region13: #{snapshot_whitener_forward.1} parent=1 // pred_fallthru
      _
    // Predicated region
    $region14: #{snapshot_whitener_forward.1} parent=1 // pred_check
      _
    $region15: #{snapshot_whitener_forward.1} parent=1 // pred_check_branch
      %21 = sbr.rel (0) target = $region17
    $region16: #{snapshot_whitener_forward.1} parent=1 // pred_region
      _
    $region17: #{snapshot_whitener_forward.1} parent=1 // pred_fallthru
      _
    // Predicated region
    $region18: #{snapshot_whitener_forward.1} parent=1 // pred_check
      _
    $region19: #{snapshot_whitener_forward.1} parent=1 // pred_check_branch
      %23 = sbr.rel (0) target = $region21
    $region20: #{snapshot_whitener_forward.1} parent=1 // pred_region
      _
    $region21: #{snapshot_whitener_forward.1} parent=1 // pred_fallthru
      _
    // Predicated region
    $region22: #{snapshot_whitener_forward.1} parent=1 // pred_check
      _
    $region23: #{snapshot_whitener_forward.1} parent=1 // pred_check_branch
      %25 = sbr.rel (0) target = $region25
    $region24: #{snapshot_whitener_forward.1} parent=1 // pred_region
      _
    $region25: #{snapshot_whitener_forward.1} parent=1 // pred_fallthru
      _
    %v27 = vld [vmem:[%s0] sm:$0xff]
    %v28 = vld [vmem:[%s0 + $0x8] sm:$0xf]
    %v29 = vld [vmem:[%s1] sm:$0x3]
    %v30 = vld [vmem:[%s2] sm:$0xff]
    %v31 = vld [vmem:[%s2 + $0x8] sm:$0xff]
    %v34 = vcombine.high %v27, %v27
    %v36 = vunpack.c.l.s4 1983009808
    %v37 = vunpack.c.0.s8 %v36
    %v38 = vlaneseq
    %v39 = vshrl.u32 %v38, 7
    %v40 = vsub.s32 %v37, %v39
    %v41 = vrot.slane %v27, %v40
    %v43 = vunpack.c.l.s4 1983009808
    %v44 = vunpack.c.0.s8 %v43
    %v45 = vlaneseq
    %v46 = vshrl.u32 %v45, 7
    %v47 = vsub.s32 %v44, %v46
    %v48 = vrot.slane %v34, %v47
    %v49 = vcombine.high %v41, %v41
    %v50 = vcombine.high %v48, %v48
    %v52 = vunpack.c.l.s4 1983009808
    %v53 = vunpack.c.0.s8 %v52
    %v54 = vlaneseq
    %v55 = vshrl.u32 %v54, 7
    %v56 = vsub.s32 %v53, %v55
    %v57 = vrot.slane %v28, %v56
    %v58 = vcombine.high %v57, %v57
    %61 = vrot.lane.b32.xlu0 %v29, 96
    %v62 = vpop.permute.xlu0 %61
    %vm64 = vcmask 785408
    %v65 = vsel %vm64, %v58, %v62
    %v67 = vcombine.low %v49, %v48
    %v68 = vcombine.low %v50, %v57
    %v70 = vunpack.c.l.s4 1983009808
    %v71 = vunpack.c.0.s8 %v70
    %v72 = vlaneseq
    %v73 = vshrl.u32 %v72, 7
    %v74 = vsub.s32 %v71, %v73
    %v75 = vrot.slane %v67, %v74
    %v77 = vunpack.c.l.s4 1983009808
    %v78 = vunpack.c.0.s8 %v77
    %v79 = vlaneseq
    %v80 = vshrl.u32 %v79, 7
    %v81 = vsub.s32 %v78, %v80
    %v82 = vrot.slane %v68, %v81
    %v83 = vcombine.low %v75, %v82
    %v84 = vcombine.low %v65, %v62
    %v86 = vunpack.c.l.s4 1983009808
    %v87 = vunpack.c.0.s8 %v86
    %v88 = vlaneseq
    %v89 = vshrl.u32 %v88, 7
    %v90 = vsub.s32 %v87, %v89
    %v91 = vrot.slane %v84, %v90
    %94 = vst [vmem:[%s7] sm:$0xff] %v83
    %vm95 = vcmask 1041408
    %vm96 = vcmask 781314
    %vm97 = vmor %vm96, %vm95
    %98 = vst.msk [vmem:[%s7 + $0x8] sm:$0xf] %vm97, %v91
    %v102 = vcombine.low %v27, %v27
    %v104 = vunpack.c.l.s4 1983009808
    %v105 = vunpack.c.0.s8 %v104
    %v106 = vlaneseq
    %v107 = vshrl.u32 %v106, 7
    %v108 = vsub.s32 %v105, %v107
    %v109 = vrot.slane %v102, %v108
    %v110 = vcombine.high %v109, %v109
    %v112 = vcombine.low %v48, %v48
    %v115 = vsel %vm95, %v41, %v110
    %v116 = vsel %vm95, %v49, %v41
    %vm117 = vcmask 1043456
    %v118 = vsel %vm117, %v115, %v112
    %v119 = vsel %vm117, %v116, %v48
    %vm120 = vcmask 1045504
    %v121 = vsel %vm120, %v118, 0.0
    %v122 = vsel %vm120, %v119, 0.0
    %v123 = vadd.f32 %v121, %v122
    %124 = vadd.xlane.f32.xlu0 %v123
    %v125 = vpop.xlane.xlu0 %124
    %v126 = vrcp.pop 256.0
    %v127 = vmul.f32 %v125, %v126
    %v128 = vsub.f32 %v118, %v127
    %v129 = vsub.f32 %v119, %v127
    %v130 = vlaneseq
    %v131 = vshrl.u32 %v130, 7
    %v132 = vsub.s32 0, %v131
    %v133 = vrot.slane %v30, %v132
    %v134 = vlaneseq
    %v135 = vshrl.u32 %v134, 7
    %v136 = vsub.s32 0, %v135
    %v137 = vrot.slane %v31, %v136
    %v138 = vmul.f32 %v128, %v133
    %v139 = vmul.f32 %v129, %v137
    %v140 = vrot.slane %v57, 6
    %v141 = vrot.slane %v65, 6
    %v142 = vrot.slane %v62, 6
    %143 = vrot.lane.b32.xlu0 %v140, 32
    %v144 = vpop.permute.xlu0 %143
    %145 = vrot.lane.b32.xlu0 %v141, 32
    %v146 = vpop.permute.xlu0 %145
    %147 = vrot.lane.b32.xlu0 %v142, 32
    %v148 = vpop.permute.xlu0 %147
    %vm149 = vcmask 261120
    %v150 = vsel %vm149, %v144, %v146
    %v151 = vsel %vm149, %v146, %v148
    %v154 = vsel %vm95, %v57, %v150
    %v155 = vsel %vm95, %v65, %v151
    %v158 = vrot.slane %v154, 2
    %v159 = vrot.slane %v155, 2
    %v162 = vsel %vm120, %v138, %v158
    %v163 = vsel %vm120, %v139, %v159
    %v164 = vpack.c.bf16 %v158, %v162
    %v165 = vpack.c.bf16 %v159, %v163
    %v166 = vld [vmem:[%s3] sm:$0xff]
    %v167 = vld [vmem:[%s3 + $0x8] sm:$0xff]
    %v168 = vld [vmem:[%s3 + $0x10] sm:$0xff]
    %v169 = vld [vmem:[%s3 + $0x18] sm:$0xff]
    %v170 = vld [vmem:[%s3 + $0x20] sm:$0xff]
    %v171 = vld [vmem:[%s3 + $0x28] sm:$0xff]
    %v172 = vld [vmem:[%s3 + $0x30] sm:$0xff]
    %v173 = vld [vmem:[%s3 + $0x38] sm:$0xff]
    %v174 = vld [vmem:[%s3 + $0x40] sm:$0xff]
    %v175 = vld [vmem:[%s3 + $0x48] sm:$0xff]
    %v176 = vld [vmem:[%s3 + $0x50] sm:$0xff]
    %v177 = vld [vmem:[%s3 + $0x58] sm:$0xff]
    %v178 = vld [vmem:[%s3 + $0x60] sm:$0xff]
    %v179 = vld [vmem:[%s3 + $0x68] sm:$0xff]
    %v180 = vld [vmem:[%s3 + $0x70] sm:$0xff]
    %v181 = vld [vmem:[%s3 + $0x78] sm:$0xff]
    %v182 = vld [vmem:[%s3 + $0x80] sm:$0xff]
    %v183 = vld [vmem:[%s3 + $0x88] sm:$0xff]
    %v184 = vld [vmem:[%s3 + $0x90] sm:$0xff]
    %v185 = vld [vmem:[%s3 + $0x98] sm:$0xff]
    %v186 = vld [vmem:[%s3 + $0xa0] sm:$0xff]
    %v187 = vld [vmem:[%s3 + $0xa8] sm:$0xff]
    %v188 = vld [vmem:[%s3 + $0xb0] sm:$0xff]
    %v189 = vld [vmem:[%s3 + $0xb8] sm:$0xff]
    %v190 = vld [vmem:[%s3 + $0xc0] sm:$0xff]
    %v191 = vld [vmem:[%s3 + $0xc8] sm:$0xff]
    %v192 = vld [vmem:[%s3 + $0xd0] sm:$0xff]
    %v193 = vld [vmem:[%s3 + $0xd8] sm:$0xff]
    %v194 = vld [vmem:[%s3 + $0xe0] sm:$0xff]
    %v195 = vld [vmem:[%s3 + $0xe8] sm:$0xff]
    %v196 = vld [vmem:[%s3 + $0xf0] sm:$0xff]
    %v197 = vld [vmem:[%s3 + $0xf8] sm:$0xff]
    %v230 = vunpack.c.l.b16 %v166
    %v231 = vunpack.c.h.b16 %v166
    %v232 = vunpack.c.l.b16 %v167
    %v233 = vunpack.c.h.b16 %v167
    %v234 = vunpack.c.l.b16 %v168
    %v235 = vunpack.c.h.b16 %v168
    %v236 = vunpack.c.l.b16 %v169
    %v237 = vunpack.c.h.b16 %v169
    %v238 = vunpack.c.l.b16 %v170
    %v239 = vunpack.c.h.b16 %v170
    %v240 = vunpack.c.l.b16 %v171
    %v241 = vunpack.c.h.b16 %v171
    %v242 = vunpack.c.l.b16 %v172
    %v243 = vunpack.c.h.b16 %v172
    %v244 = vunpack.c.l.b16 %v173
    %v245 = vunpack.c.h.b16 %v173
    %v246 = vunpack.c.l.b16 %v174
    %v247 = vunpack.c.h.b16 %v174
    %v248 = vunpack.c.l.b16 %v175
    %v249 = vunpack.c.h.b16 %v175
    %v250 = vunpack.c.l.b16 %v176
    %v251 = vunpack.c.h.b16 %v176
    %v252 = vunpack.c.l.b16 %v177
    %v253 = vunpack.c.h.b16 %v177
    %v254 = vunpack.c.l.b16 %v178
    %v255 = vunpack.c.h.b16 %v178
    %v256 = vunpack.c.l.b16 %v179
    %v257 = vunpack.c.h.b16 %v179
    %v258 = vunpack.c.l.b16 %v180
    %v259 = vunpack.c.h.b16 %v180
    %v260 = vunpack.c.l.b16 %v181
    %v261 = vunpack.c.h.b16 %v181
    %v262 = vunpack.c.l.b16 %v182
    %v263 = vunpack.c.h.b16 %v182
    %v264 = vunpack.c.l.b16 %v183
    %v265 = vunpack.c.h.b16 %v183
    %v266 = vunpack.c.l.b16 %v184
    %v267 = vunpack.c.h.b16 %v184
    %v268 = vunpack.c.l.b16 %v185
    %v269 = vunpack.c.h.b16 %v185
    %v270 = vunpack.c.l.b16 %v186
    %v271 = vunpack.c.h.b16 %v186
    %v272 = vunpack.c.l.b16 %v187
    %v273 = vunpack.c.h.b16 %v187
    %v274 = vunpack.c.l.b16 %v188
    %v275 = vunpack.c.h.b16 %v188
    %v276 = vunpack.c.l.b16 %v189
    %v277 = vunpack.c.h.b16 %v189
    %v278 = vunpack.c.l.b16 %v190
    %v279 = vunpack.c.h.b16 %v190
    %v280 = vunpack.c.l.b16 %v191
    %v281 = vunpack.c.h.b16 %v191
    %v282 = vunpack.c.l.b16 %v192
    %v283 = vunpack.c.h.b16 %v192
    %v284 = vunpack.c.l.b16 %v193
    %v285 = vunpack.c.h.b16 %v193
    %v286 = vunpack.c.l.b16 %v194
    %v287 = vunpack.c.h.b16 %v194
    %v288 = vunpack.c.l.b16 %v195
    %v289 = vunpack.c.h.b16 %v195
    %v290 = vunpack.c.l.b16 %v196
    %v291 = vunpack.c.h.b16 %v196
    %v292 = vunpack.c.l.b16 %v197
    %v293 = vunpack.c.h.b16 %v197
    %v294 = vpack.c.b16 %v232, %v230
    %v295 = vpack.c.b16 %v233, %v231
    %v296 = vpack.c.b16 %v236, %v234
    %v297 = vpack.c.b16 %v237, %v235
    %v298 = vpack.c.b16 %v240, %v238
    %v299 = vpack.c.b16 %v241, %v239
    %v300 = vpack.c.b16 %v244, %v242
    %v301 = vpack.c.b16 %v245, %v243
    %v302 = vpack.c.b16 %v248, %v246
    %v303 = vpack.c.b16 %v249, %v247
    %v304 = vpack.c.b16 %v252, %v250
    %v305 = vpack.c.b16 %v253, %v251
    %v306 = vpack.c.b16 %v256, %v254
    %v307 = vpack.c.b16 %v257, %v255
    %v308 = vpack.c.b16 %v260, %v258
    %v309 = vpack.c.b16 %v261, %v259
    %v310 = vpack.c.b16 %v264, %v262
    %v311 = vpack.c.b16 %v265, %v263
    %v312 = vpack.c.b16 %v268, %v266
    %v313 = vpack.c.b16 %v269, %v267
    %v314 = vpack.c.b16 %v272, %v270
    %v315 = vpack.c.b16 %v273, %v271
    %v316 = vpack.c.b16 %v276, %v274
    %v317 = vpack.c.b16 %v277, %v275
    %v318 = vpack.c.b16 %v280, %v278
    %v319 = vpack.c.b16 %v281, %v279
    %v320 = vpack.c.b16 %v284, %v282
    %v321 = vpack.c.b16 %v285, %v283
    %v322 = vpack.c.b16 %v288, %v286
    %v323 = vpack.c.b16 %v289, %v287
    %v324 = vpack.c.b16 %v292, %v290
    %v325 = vpack.c.b16 %v293, %v291
    %358 = vmatprep.subr.bf16.mxu0 %v295
    %359 = vmatpush1.bf16.msra.mxu0 %v294
    %360 = vmatprep.subr.bf16.mxu0 %v297
    %361 = vmatpush1.bf16.msra.mxu0 %v296
    %362 = vmatprep.subr.bf16.mxu0 %v299
    %363 = vmatpush1.bf16.msra.mxu0 %v298
    %364 = vmatprep.subr.bf16.mxu0 %v301
    %365 = vmatpush1.bf16.msra.mxu0 %v300
    %366 = vmatprep.subr.bf16.mxu0 %v303
    %367 = vmatpush1.bf16.msra.mxu0 %v302
    %368 = vmatprep.subr.bf16.mxu0 %v305
    %369 = vmatpush1.bf16.msra.mxu0 %v304
    %370 = vmatprep.subr.bf16.mxu0 %v307
    %371 = vmatpush1.bf16.msra.mxu0 %v306
    %372 = vmatprep.subr.bf16.mxu0 %v309
    %373 = vmatpush1.bf16.msra.mxu0 %v308
    %374 = vmatprep.subr.bf16.mxu0 %v311
    %375 = vmatpush1.bf16.msra.mxu0 %v310
    %376 = vmatprep.subr.bf16.mxu0 %v313
    %377 = vmatpush1.bf16.msra.mxu0 %v312
    %378 = vmatprep.subr.bf16.mxu0 %v315
    %379 = vmatpush1.bf16.msra.mxu0 %v314
    %380 = vmatprep.subr.bf16.mxu0 %v317
    %381 = vmatpush1.bf16.msra.mxu0 %v316
    %382 = vmatprep.subr.bf16.mxu0 %v319
    %383 = vmatpush1.bf16.msra.mxu0 %v318
    %384 = vmatprep.subr.bf16.mxu0 %v321
    %385 = vmatpush1.bf16.msra.mxu0 %v320
    %386 = vmatprep.subr.bf16.mxu0 %v323
    %387 = vmatpush1.bf16.msra.mxu0 %v322
    %388 = vmatprep.subr.bf16.mxu0 %v325
    %389 = vmatpush1.bf16.msra.mxu0 %v324
    %390 = vmatprep.mubr.bf16.mxu0 %v165
    %391 = vmatmul.mubr.bf16.gmra.mrb[0].mxu0 %v164
    %v392 = vpop.f32.mrb[0].mxu0
    %v393 = vadd.f32 0.0, %v392
    %v394 = vpop.f32.mrb[0].mxu0
    %v395 = vadd.f32 0.0, %v394
    %v396 = vpop.f32.mrb[0].mxu0
    %v397 = vadd.f32 0.0, %v396
    %v398 = vpop.f32.mrb[0].mxu0
    %v399 = vadd.f32 0.0, %v398
    %400 = vdwg.mxu0
    %v401 = vlaneseq
    %v402 = vand.u32 %v401, 127
    %vm403 = vcmp.eq.s32.totalorder %v402, 0
    %v404 = vsel %vm403, 0.0, %v395
    %v405 = vsel %vm403, 0.0, %v399
    %v406 = vmul.f32 %v393, %v393
    %v407 = vmul.f32 %v404, %v404
    %v408 = vadd.f32 %v406, %v407
    %v409 = vmul.f32 %v395, %v395
    %v411 = vrot.slane %v408, 2
    %v413 = vmin.f32 %v408, %v411
    %v414 = vmax.f32 %v408, %v411
    %v415 = vrot.slane %v408, 4
    %v417 = vmin.f32 %v414, %v415
    %v418 = vmax.f32 %v413, %v417
    %v420 = vrot.slane %v409, 2
    %v422 = vmin.f32 %v409, %v420
    %v423 = vmax.f32 %v409, %v420
    %v424 = vrot.slane %v409, 4
    %v426 = vmin.f32 %v423, %v424
    %v427 = vmax.f32 %v422, %v426
    %vm428 = vcmp.ge.s32.totalorder %v402, 16
    %v429 = vmax.f32 %v418, 1e-30
    %v430 = vrsqrt.pop %v429
    %v431 = vsel %vm428, %v430, 0.0
    %v432 = vmax.f32 %v427, 1e-30
    %v433 = vrsqrt.pop %v432
    %v434 = vpack.c.bf16 %v431, %v431
    %v435 = vld [vmem:[%s4] sm:$0xff]
    %v436 = vld [vmem:[%s4 + $0x8] sm:$0xff]
    %v437 = vld [vmem:[%s4 + $0x10] sm:$0xff]
    %v438 = vld [vmem:[%s4 + $0x18] sm:$0xff]
    %v439 = vld [vmem:[%s4 + $0x20] sm:$0xff]
    %v440 = vld [vmem:[%s4 + $0x28] sm:$0xff]
    %v441 = vld [vmem:[%s4 + $0x30] sm:$0xff]
    %v442 = vld [vmem:[%s4 + $0x38] sm:$0xff]
    %v443 = vld [vmem:[%s4 + $0x40] sm:$0xff]
    %v444 = vld [vmem:[%s4 + $0x48] sm:$0xff]
    %v445 = vld [vmem:[%s4 + $0x50] sm:$0xff]
    %v446 = vld [vmem:[%s4 + $0x58] sm:$0xff]
    %v447 = vld [vmem:[%s4 + $0x60] sm:$0xff]
    %v448 = vld [vmem:[%s4 + $0x68] sm:$0xff]
    %v449 = vld [vmem:[%s4 + $0x70] sm:$0xff]
    %v450 = vld [vmem:[%s4 + $0x78] sm:$0xff]
    %452 = vset.pattern.permute.xlu0 0
    %453 = vperm.xlu0 %452, %v433
    %v454 = vpop.permute.xlu0 %453
    %v456 = vlaneseq
    %v457 = vshrl.u32 %v456, 7
    %v458 = vsub.s32 1, %v457
    %v459 = vrot.slane %v30, %v458
    %v460 = vlaneseq
    %v461 = vshrl.u32 %v460, 7
    %v462 = vsub.s32 1, %v461
    %v463 = vrot.slane %v31, %v462
    %v464 = vmul.f32 %v454, %v459
    %v465 = vmul.f32 %v454, %v463
    %v482 = vunpack.c.l.b16 %v435
    %v483 = vunpack.c.h.b16 %v435
    %v484 = vunpack.c.l.b16 %v436
    %v485 = vunpack.c.h.b16 %v436
    %v486 = vunpack.c.l.b16 %v437
    %v487 = vunpack.c.h.b16 %v437
    %v488 = vunpack.c.l.b16 %v438
    %v489 = vunpack.c.h.b16 %v438
    %v490 = vunpack.c.l.b16 %v439
    %v491 = vunpack.c.h.b16 %v439
    %v492 = vunpack.c.l.b16 %v440
    %v493 = vunpack.c.h.b16 %v440
    %v494 = vunpack.c.l.b16 %v441
    %v495 = vunpack.c.h.b16 %v441
    %v496 = vunpack.c.l.b16 %v442
    %v497 = vunpack.c.h.b16 %v442
    %v498 = vunpack.c.l.b16 %v443
    %v499 = vunpack.c.h.b16 %v443
    %v500 = vunpack.c.l.b16 %v444
    %v501 = vunpack.c.h.b16 %v444
    %v502 = vunpack.c.l.b16 %v445
    %v503 = vunpack.c.h.b16 %v445
    %v504 = vunpack.c.l.b16 %v446
    %v505 = vunpack.c.h.b16 %v446
    %v506 = vunpack.c.l.b16 %v447
    %v507 = vunpack.c.h.b16 %v447
    %v508 = vunpack.c.l.b16 %v448
    %v509 = vunpack.c.h.b16 %v448
    %v510 = vunpack.c.l.b16 %v449
    %v511 = vunpack.c.h.b16 %v449
    %v512 = vunpack.c.l.b16 %v450
    %v513 = vunpack.c.h.b16 %v450
    %v514 = vpack.c.b16 %v484, %v482
    %v515 = vpack.c.b16 %v485, %v483
    %v516 = vpack.c.b16 %v488, %v486
    %v517 = vpack.c.b16 %v489, %v487
    %v518 = vpack.c.b16 %v492, %v490
    %v519 = vpack.c.b16 %v493, %v491
    %v520 = vpack.c.b16 %v496, %v494
    %v521 = vpack.c.b16 %v497, %v495
    %v522 = vpack.c.b16 %v500, %v498
    %v523 = vpack.c.b16 %v501, %v499
    %v524 = vpack.c.b16 %v504, %v502
    %v525 = vpack.c.b16 %v505, %v503
    %v526 = vpack.c.b16 %v508, %v506
    %v527 = vpack.c.b16 %v509, %v507
    %v528 = vpack.c.b16 %v512, %v510
    %v529 = vpack.c.b16 %v513, %v511
    %546 = vmatprep.subr.bf16.mxu0 %v515
    %547 = vmatpush1.bf16.msra.mxu0 %v514
    %548 = vmatprep.subr.bf16.mxu0 %v517
    %549 = vmatpush1.bf16.msra.mxu0 %v516
    %550 = vmatprep.subr.bf16.mxu0 %v519
    %551 = vmatpush1.bf16.msra.mxu0 %v518
    %552 = vmatprep.subr.bf16.mxu0 %v521
    %553 = vmatpush1.bf16.msra.mxu0 %v520
    %554 = vmatprep.subr.bf16.mxu0 %v523
    %555 = vmatpush1.bf16.msra.mxu0 %v522
    %556 = vmatprep.subr.bf16.mxu0 %v525
    %557 = vmatpush1.bf16.msra.mxu0 %v524
    %558 = vmatprep.subr.bf16.mxu0 %v527
    %559 = vmatpush1.bf16.msra.mxu0 %v526
    %560 = vmatprep.subr.bf16.mxu0 %v529
    %561 = vmatpush1.bf16.msra.mxu0 %v528
    %562 = vmatprep.subr.bf16.mxu0 0
    %563 = vmatpush1.bf16.msra.mxu0 0
    %564 = vmatprep.subr.bf16.mxu0 0
    %565 = vmatpush1.bf16.msra.mxu0 0
    %566 = vmatprep.subr.bf16.mxu0 0
    %567 = vmatpush1.bf16.msra.mxu0 0
    %568 = vmatprep.subr.bf16.mxu0 0
    %569 = vmatpush1.bf16.msra.mxu0 0
    %570 = vmatprep.subr.bf16.mxu0 0
    %571 = vmatpush1.bf16.msra.mxu0 0
    %572 = vmatprep.subr.bf16.mxu0 0
    %573 = vmatpush1.bf16.msra.mxu0 0
    %574 = vmatprep.subr.bf16.mxu0 0
    %575 = vmatpush1.bf16.msra.mxu0 0
    %576 = vmatprep.subr.bf16.mxu0 0
    %577 = vmatpush1.bf16.msra.mxu0 0
    %578 = vmatprep.mubr.bf16.mxu0 0
    %579 = vmatmul.mubr.bf16.gmra.mrb[0].mxu0 %v434
    %v580 = vpop.f32.mrb[0].mxu0
    %v581 = vadd.f32 %v464, %v580
    %v582 = vpop.f32.mrb[0].mxu0
    %v583 = vadd.f32 %v465, %v582
    %v584 = vpop.f32.mrb[0].mxu0
    %v585 = vpop.f32.mrb[0].mxu0
    %586 = vdwg.mxu0
    %v587 = vsel %vm403, 0.0, %v583
    %v589 = vrot.slane %v581, 6
    %v591 = vsel %vm95, %v581, %v589
    %v593 = vrot.slane %v587, 6
    %v595 = vsel %vm95, %v587, %v593
    %v597 = vrot.slane %v583, 6
    %v599 = vsel %vm95, %v583, %v597
    %v601 = vrot.slane %v591, 2
    %v603 = vmul.f32 %v393, %v601
    %v604 = vmul.f32 %v397, %v601
    %v606 = vrot.slane %v595, 2
    %v608 = vmul.f32 %v404, %v606
    %v609 = vmul.f32 %v405, %v606
    %v610 = vadd.f32 %v603, %v608
    %v611 = vadd.f32 %v604, %v609
    %v612 = vmul.f32 %v404, %v601
    %v613 = vmul.f32 %v405, %v601
    %v614 = vmul.f32 %v393, %v606
    %v615 = vmul.f32 %v397, %v606
    %v616 = vsub.f32 %v612, %v614
    %v617 = vsub.f32 %v613, %v615
    %v619 = vrot.slane %v599, 2
    %v621 = vmul.f32 %v395, %v619
    %v622 = vmul.f32 %v399, %v619
    %624 = vset.pattern.permute.xlu0 0
    %625 = vperm.xlu0 %624, %v621
    %v626 = vpop.permute.xlu0 %625
    %629 = vset.pattern.permute.xlu0 0
    %630 = vperm.xlu0 %629, %v622
    %v631 = vpop.permute.xlu0 %630
    %v633 = vsel %vm403, %v626, %v616
    %v634 = vsel %vm403, %v631, %v617
    %v635 = vpack.c.bf16 %v611, %v610
    %v636 = vpack.c.bf16 %v634, %v633
    %v637 = vld [vmem:[%s5] sm:$0xff]
    %v638 = vld [vmem:[%s5 + $0x8] sm:$0xff]
    %v639 = vld [vmem:[%s5 + $0x10] sm:$0xff]
    %v640 = vld [vmem:[%s5 + $0x18] sm:$0xff]
    %v641 = vld [vmem:[%s5 + $0x20] sm:$0xff]
    %v642 = vld [vmem:[%s5 + $0x28] sm:$0xff]
    %v643 = vld [vmem:[%s5 + $0x30] sm:$0xff]
    %v644 = vld [vmem:[%s5 + $0x38] sm:$0xff]
    %v645 = vld [vmem:[%s5 + $0x40] sm:$0xff]
    %v646 = vld [vmem:[%s5 + $0x48] sm:$0xff]
    %v647 = vld [vmem:[%s5 + $0x50] sm:$0xff]
    %v648 = vld [vmem:[%s5 + $0x58] sm:$0xff]
    %v649 = vld [vmem:[%s5 + $0x60] sm:$0xff]
    %v650 = vld [vmem:[%s5 + $0x68] sm:$0xff]
    %v651 = vld [vmem:[%s5 + $0x70] sm:$0xff]
    %v652 = vld [vmem:[%s5 + $0x78] sm:$0xff]
    %v653 = vld [vmem:[%s5 + $0x80] sm:$0xff]
    %v654 = vld [vmem:[%s5 + $0x88] sm:$0xff]
    %v655 = vld [vmem:[%s5 + $0x90] sm:$0xff]
    %v656 = vld [vmem:[%s5 + $0x98] sm:$0xff]
    %v657 = vld [vmem:[%s5 + $0xa0] sm:$0xff]
    %v658 = vld [vmem:[%s5 + $0xa8] sm:$0xff]
    %v659 = vld [vmem:[%s5 + $0xb0] sm:$0xff]
    %v660 = vld [vmem:[%s5 + $0xb8] sm:$0xff]
    %v661 = vld [vmem:[%s5 + $0xc0] sm:$0xff]
    %v662 = vld [vmem:[%s5 + $0xc8] sm:$0xff]
    %v663 = vld [vmem:[%s5 + $0xd0] sm:$0xff]
    %v664 = vld [vmem:[%s5 + $0xd8] sm:$0xff]
    %v665 = vld [vmem:[%s5 + $0xe0] sm:$0xff]
    %v666 = vld [vmem:[%s5 + $0xe8] sm:$0xff]
    %v667 = vld [vmem:[%s5 + $0xf0] sm:$0xff]
    %v668 = vld [vmem:[%s5 + $0xf8] sm:$0xff]
    %v671 = vrot.slane %v635, 3
    %v672 = vrot.slane %v636, 3
    %v707 = vunpack.c.l.b16 %v637
    %v708 = vunpack.c.h.b16 %v637
    %v709 = vunpack.c.l.b16 %v638
    %v710 = vunpack.c.h.b16 %v638
    %v711 = vunpack.c.l.b16 %v639
    %v712 = vunpack.c.h.b16 %v639
    %v713 = vunpack.c.l.b16 %v640
    %v714 = vunpack.c.h.b16 %v640
    %v715 = vunpack.c.l.b16 %v641
    %v716 = vunpack.c.h.b16 %v641
    %v717 = vunpack.c.l.b16 %v642
    %v718 = vunpack.c.h.b16 %v642
    %v719 = vunpack.c.l.b16 %v643
    %v720 = vunpack.c.h.b16 %v643
    %v721 = vunpack.c.l.b16 %v644
    %v722 = vunpack.c.h.b16 %v644
    %v723 = vunpack.c.l.b16 %v645
    %v724 = vunpack.c.h.b16 %v645
    %v725 = vunpack.c.l.b16 %v646
    %v726 = vunpack.c.h.b16 %v646
    %v727 = vunpack.c.l.b16 %v647
    %v728 = vunpack.c.h.b16 %v647
    %v729 = vunpack.c.l.b16 %v648
    %v730 = vunpack.c.h.b16 %v648
    %v731 = vunpack.c.l.b16 %v649
    %v732 = vunpack.c.h.b16 %v649
    %v733 = vunpack.c.l.b16 %v650
    %v734 = vunpack.c.h.b16 %v650
    %v735 = vunpack.c.l.b16 %v651
    %v736 = vunpack.c.h.b16 %v651
    %v737 = vunpack.c.l.b16 %v652
    %v738 = vunpack.c.h.b16 %v652
    %v739 = vunpack.c.l.b16 %v653
    %v740 = vunpack.c.h.b16 %v653
    %v741 = vunpack.c.l.b16 %v654
    %v742 = vunpack.c.h.b16 %v654
    %v743 = vunpack.c.l.b16 %v655
    %v744 = vunpack.c.h.b16 %v655
    %v745 = vunpack.c.l.b16 %v656
    %v746 = vunpack.c.h.b16 %v656
    %v747 = vunpack.c.l.b16 %v657
    %v748 = vunpack.c.h.b16 %v657
    %v749 = vunpack.c.l.b16 %v658
    %v750 = vunpack.c.h.b16 %v658
    %v751 = vunpack.c.l.b16 %v659
    %v752 = vunpack.c.h.b16 %v659
    %v753 = vunpack.c.l.b16 %v660
    %v754 = vunpack.c.h.b16 %v660
    %v755 = vunpack.c.l.b16 %v661
    %v756 = vunpack.c.h.b16 %v661
    %v757 = vunpack.c.l.b16 %v662
    %v758 = vunpack.c.h.b16 %v662
    %v759 = vunpack.c.l.b16 %v663
    %v760 = vunpack.c.h.b16 %v663
    %v761 = vunpack.c.l.b16 %v664
    %v762 = vunpack.c.h.b16 %v664
    %v763 = vunpack.c.l.b16 %v665
    %v764 = vunpack.c.h.b16 %v665
    %v765 = vunpack.c.l.b16 %v666
    %v766 = vunpack.c.h.b16 %v666
    %v767 = vunpack.c.l.b16 %v667
    %v768 = vunpack.c.h.b16 %v667
    %v769 = vunpack.c.l.b16 %v668
    %v770 = vunpack.c.h.b16 %v668
    %v771 = vpack.c.b16 %v709, %v707
    %v772 = vpack.c.b16 %v710, %v708
    %v773 = vpack.c.b16 %v713, %v711
    %v774 = vpack.c.b16 %v714, %v712
    %v775 = vpack.c.b16 %v717, %v715
    %v776 = vpack.c.b16 %v718, %v716
    %v777 = vpack.c.b16 %v721, %v719
    %v778 = vpack.c.b16 %v722, %v720
    %v779 = vpack.c.b16 %v725, %v723
    %v780 = vpack.c.b16 %v726, %v724
    %v781 = vpack.c.b16 %v729, %v727
    %v782 = vpack.c.b16 %v730, %v728
    %v783 = vpack.c.b16 %v733, %v731
    %v784 = vpack.c.b16 %v734, %v732
    %v785 = vpack.c.b16 %v737, %v735
    %v786 = vpack.c.b16 %v738, %v736
    %v787 = vpack.c.b16 %v741, %v739
    %v788 = vpack.c.b16 %v742, %v740
    %v789 = vpack.c.b16 %v745, %v743
    %v790 = vpack.c.b16 %v746, %v744
    %v791 = vpack.c.b16 %v749, %v747
    %v792 = vpack.c.b16 %v750, %v748
    %v793 = vpack.c.b16 %v753, %v751
    %v794 = vpack.c.b16 %v754, %v752
    %v795 = vpack.c.b16 %v757, %v755
    %v796 = vpack.c.b16 %v758, %v756
    %v797 = vpack.c.b16 %v761, %v759
    %v798 = vpack.c.b16 %v762, %v760
    %v799 = vpack.c.b16 %v765, %v763
    %v800 = vpack.c.b16 %v766, %v764
    %v801 = vpack.c.b16 %v769, %v767
    %v802 = vpack.c.b16 %v770, %v768
    %835 = vmatprep.subr.bf16.mxu0 %v772
    %836 = vmatpush1.bf16.msra.mxu0 %v771
    %837 = vmatprep.subr.bf16.mxu0 %v774
    %838 = vmatpush1.bf16.msra.mxu0 %v773
    %839 = vmatprep.subr.bf16.mxu0 %v776
    %840 = vmatpush1.bf16.msra.mxu0 %v775
    %841 = vmatprep.subr.bf16.mxu0 %v778
    %842 = vmatpush1.bf16.msra.mxu0 %v777
    %843 = vmatprep.subr.bf16.mxu0 %v780
    %844 = vmatpush1.bf16.msra.mxu0 %v779
    %845 = vmatprep.subr.bf16.mxu0 %v782
    %846 = vmatpush1.bf16.msra.mxu0 %v781
    %847 = vmatprep.subr.bf16.mxu0 %v784
    %848 = vmatpush1.bf16.msra.mxu0 %v783
    %849 = vmatprep.subr.bf16.mxu0 %v786
    %850 = vmatpush1.bf16.msra.mxu0 %v785
    %851 = vmatprep.subr.bf16.mxu0 %v788
    %852 = vmatpush1.bf16.msra.mxu0 %v787
    %853 = vmatprep.subr.bf16.mxu0 %v790
    %854 = vmatpush1.bf16.msra.mxu0 %v789
    %855 = vmatprep.subr.bf16.mxu0 %v792
    %856 = vmatpush1.bf16.msra.mxu0 %v791
    %857 = vmatprep.subr.bf16.mxu0 %v794
    %858 = vmatpush1.bf16.msra.mxu0 %v793
    %859 = vmatprep.subr.bf16.mxu0 %v796
    %860 = vmatpush1.bf16.msra.mxu0 %v795
    %861 = vmatprep.subr.bf16.mxu0 %v798
    %862 = vmatpush1.bf16.msra.mxu0 %v797
    %863 = vmatprep.subr.bf16.mxu0 %v800
    %864 = vmatpush1.bf16.msra.mxu0 %v799
    %865 = vmatprep.subr.bf16.mxu0 %v802
    %866 = vmatpush1.bf16.msra.mxu0 %v801
    %867 = vmatprep.mubr.bf16.mxu0 %v672
    %868 = vmatmul.mubr.bf16.gmra.mrb[0].mxu0 %v671
    %v869 = vpop.f32.mrb[0].mxu0
    %v870 = vadd.f32 0.0, %v869
    %v871 = vpop.f32.mrb[0].mxu0
    %v872 = vpop.f32.mrb[0].mxu0
    %v873 = vpop.f32.mrb[0].mxu0
    %874 = vdwg.mxu0
    %v876 = vrot.slane %v870, 2
    %877 = vrot.lane.b32.xlu0 %v876, 96
    %v878 = vpop.permute.xlu0 %877
    %v879 = vrot.slane %v870, 6
    %v880 = vrot.slane %v878, 6
    %881 = vrot.lane.b32.xlu0 %v879, 96
    %v882 = vpop.permute.xlu0 %881
    %883 = vrot.lane.b32.xlu0 %v880, 96
    %v884 = vpop.permute.xlu0 %883
    %v885 = vsel %vm64, %v882, %v884
    %v887 = vrot.slane %v870, 4
    %v888 = vrot.slane %v878, 4
    %889 = vrot.lane.b32.xlu0 %v887, 64
    %v890 = vpop.permute.xlu0 %889
    %891 = vrot.lane.b32.xlu0 %v888, 64
    %v892 = vpop.permute.xlu0 %891
    %vm893 = vcmask 523264
    %v894 = vsel %vm893, %v890, %v892
    %v896 = vrot.slane %v878, 2
    %897 = vrot.lane.b32.xlu0 %v876, 32
    %v898 = vpop.permute.xlu0 %897
    %899 = vrot.lane.b32.xlu0 %v896, 32
    %v900 = vpop.permute.xlu0 %899
    %v901 = vsel %vm149, %v898, %v900
    %v903 = vsel %vm95, %v870, %v885
    %v904 = vsel %vm117, %v903, %v894
    %v905 = vsel %vm120, %v904, %v901
    %906 = vst [vmem:[#allocation2] sm:$0xff] %v905
    // Predicated region
    $region26: #{snapshot_whitener_forward.1} parent=1 // pred_check
      _
    $region27: #{snapshot_whitener_forward.1} parent=1 // pred_check_branch
      %908 = sbr.rel (0) target = $region29
    $region28: #{snapshot_whitener_forward.1} parent=1 // pred_region
      %s910 = ssub.s32 128, 128
      %911 = vsyncadd [#allocation3], %s910
      %s913 = sshll.u32 [#allocation2], 4
      %s914 = int_to_ptr.vmem [resolvable:$true] %s913
      %916 = dma.vmem_to_hbm [thread:$0]  %s914, 128, %s6, [#allocation3]
    $region29: #{snapshot_whitener_forward.1} parent=1 // pred_fallthru
      _
    // Predicated region
    $region30: #{snapshot_whitener_forward.1} parent=1 // pred_check
      _
    $region31: #{snapshot_whitener_forward.1} parent=1 // pred_check_branch
      %918 = sbr.rel (0) target = $region33
    $region32: #{snapshot_whitener_forward.1} parent=1 // pred_region
      _
    $region33: #{snapshot_whitener_forward.1} parent=1 // pred_fallthru
      _
    // Predicated region
    $region34: #{snapshot_whitener_forward.1} parent=1 // pred_check
      _
    $region35: #{snapshot_whitener_forward.1} parent=1 // pred_check_branch
      %920 = sbr.rel (0) target = $region37
    $region36: #{snapshot_whitener_forward.1} parent=1 // pred_region
      %921 = dma.done [#allocation3], 128
    $region37: #{snapshot_whitener_forward.1} parent=1 // pred_fallthru
      _
    // Predicated region
    $region38: #{snapshot_whitener_forward.1} parent=1 // pred_check
      _
    $region39: #{snapshot_whitener_forward.1} parent=1 // pred_check_branch
      %923 = sbr.rel (0) target = $region41
    $region40: #{snapshot_whitener_forward.1} parent=1 // pred_region
      _
    $region41: #{snapshot_whitener_forward.1} parent=1 // pred_fallthru
      _
    %924 = vsyncpa [#allocation3], 1

</llo_original>
